<compile_context>
chip_gen: v7x
topology: tpu7x:2x2x1
jax: 0.10.0
libtpu: 0.0.40
codegen_flags: <defaults>
</compile_context>

<pallas_src>
import jax
import jax.numpy as jnp
from jax.experimental import pallas as pl
from jax.experimental.pallas import tpu as pltpu

HIDDEN = 64


def critic_kernel(x_ref, w1_ref, w2_ref, w3_ref, b_ref, out_ref):
    x = x_ref[...]

    # Packed bias slab: row 0 = b1 (64), row 1 = b2 (64), row 2 = [b3, 0, ...].
    b1 = b_ref[0:1, :]        # (1, 64)
    b2 = b_ref[1:2, :]        # (1, 64)
    b3 = b_ref[2:3, 0:1]      # (1, 1)

    # fc1 + ReLU
    h1 = jnp.dot(x, w1_ref[...], preferred_element_type=jnp.float32) + b1
    h1 = jnp.maximum(h1, 0.0)

    # fc2 + ReLU
    h2 = jnp.dot(h1, w2_ref[...], preferred_element_type=jnp.float32) + b2
    h2 = jnp.maximum(h2, 0.0)

    # fc3 (value head, no activation)
    v = jnp.dot(h2, w3_ref[...], preferred_element_type=jnp.float32) + b3
    out_ref[...] = v.astype(out_ref.dtype)


def critic_forward(x, packed, *, max_tile_b=256):
    """x: (B, n_states) f32. packed: dict with w1/w2/w3 (in,out) and bias slab."""
    B, n_states = x.shape
    w1, w2, w3, bias = packed["w1"], packed["w2"], packed["w3"], packed["bias"]
    vmem = pl.BlockSpec(memory_space=pltpu.MemorySpace.VMEM)

    if B <= max_tile_b:
        # Gridless: everything fits comfortably in VMEM; single invocation.
        return pl.pallas_call(
            critic_kernel,
            out_shape=jax.ShapeDtypeStruct((B, 1), jnp.float32),
            in_specs=[vmem] * 5,
            out_specs=vmem,
        )(x, w1, w2, w3, bias)

    # Large-batch path: shard the batch over a parallel grid axis
    # (megacore sharding on v7x; amortizes launch overhead elsewhere).
    # NOTE: on v5e prefer max_tile_b=128 (4x128^2 MXU tiles).
    tb = max_tile_b
    b_pad = pl.cdiv(B, tb) * tb
    if b_pad != B:
        x = jnp.pad(x, ((0, b_pad - B), (0, 0)))

    out = pl.pallas_call(
        critic_kernel,
        out_shape=jax.ShapeDtypeStruct((b_pad, 1), jnp.float32),
        grid=(b_pad // tb,),
        in_specs=[
            pl.BlockSpec((tb, n_states), lambda i: (i, 0)),
            pl.BlockSpec(w1.shape, lambda i: (0, 0)),
            pl.BlockSpec(w2.shape, lambda i: (0, 0)),
            pl.BlockSpec(w3.shape, lambda i: (0, 0)),
            pl.BlockSpec(bias.shape, lambda i: (0, 0)),
        ],
        out_specs=pl.BlockSpec((tb, 1), lambda i: (i, 0)),
        compiler_params=pltpu.CompilerParams(
            dimension_semantics=("parallel",)),
    )(x, w1, w2, w3, bias)
    return out[:B]


def init_params(key, n_states):
    """Deterministic synthetic init (PyTorch-like uniform fan-in scaling)."""
    ks = jax.random.split(key, 6)

    def linear(kw, kb, fan_in, fan_out):
        bound = 1.0 / jnp.sqrt(fan_in)
        # stored as (in, out) so the kernel does x @ W + b
        w = jax.random.uniform(kw, (fan_in, fan_out), jnp.float32, -bound, bound)
        b = jax.random.uniform(kb, (1, fan_out), jnp.float32, -bound, bound)
        return w, b

    w1, b1 = linear(ks[0], ks[1], n_states, HIDDEN)
    w2, b2 = linear(ks[2], ks[3], HIDDEN, HIDDEN)
    w3, b3 = linear(ks[4], ks[5], HIDDEN, 1)
    return dict(w1=w1, b1=b1, w2=w2, b2=b2, w3=w3, b3=b3)


def pack_params(p):
    """Pack the three biases into one (3, HIDDEN) slab (done once, outside the kernel)."""
    bias = jnp.zeros((3, HIDDEN), jnp.float32)
    bias = bias.at[0, :].set(p["b1"].reshape(-1))
    bias = bias.at[1, :].set(p["b2"].reshape(-1))
    bias = bias.at[2, 0].set(p["b3"].reshape(-1)[0])
    return dict(w1=p["w1"], w2=p["w2"], w3=p["w3"], bias=bias)


def critic_reference(x, p):
    """Pure-JAX reference matching the PyTorch Critic forward."""
    h1 = jax.nn.relu(x @ p["w1"] + p["b1"])
    h2 = jax.nn.relu(h1 @ p["w2"] + p["b2"])
    return h2 @ p["w3"] + p["b3"]


if __name__ == "__main__":
    n_states = 16
    batch = 8

    key = jax.random.PRNGKey(0)
    k_params, k_x1, k_x2 = jax.random.split(key, 3)

    params = init_params(k_params, n_states)
    packed = pack_params(params)

    # --- small batch: gridless, fully VMEM-resident path ---
    x = jax.random.normal(k_x1, (batch, n_states), jnp.float32)
    v = jax.block_until_ready(critic_forward(x, packed))
    v_ref = critic_reference(x, params)
    assert v.shape == (batch, 1)
    assert jnp.allclose(v, v_ref, atol=1e-5, rtol=1e-5)

    # --- larger batch: parallel batch-grid path (exercises tiling + padding) ---
    big_b = 300  # not a multiple of the tile -> exercises pad/slice handling
    xb = jax.random.normal(k_x2, (big_b, n_states), jnp.float32)
    vb = jax.block_until_ready(critic_forward(xb, packed, max_tile_b=256))
    vb_ref = critic_reference(xb, params)
    assert vb.shape == (big_b, 1)
    assert jnp.allclose(vb, vb_ref, atol=1e-5, rtol=1e-5)

    print("KERNEL_OK")
</pallas_src>

<mosaic_0001>
module attributes {stable_mosaic.version = 11 : i64} {
  func.func @critic_kernel(%arg0: memref<8x16xf32, #tpu.memory_space<vmem>>, %arg1: memref<16x64xf32, #tpu.memory_space<vmem>>, %arg2: memref<64x64xf32, #tpu.memory_space<vmem>>, %arg3: memref<64x1xf32, #tpu.memory_space<vmem>>, %arg4: memref<3x64xf32, #tpu.memory_space<vmem>>, %arg5: memref<8x1xf32, #tpu.memory_space<vmem>>) attributes {dimension_semantics = [], scalar_prefetch = 0 : i64, scratch_operands = 0 : i64, tpu.core_type = #tpu.core_type<tc>} {
    %c0 = arith.constant 0 : index
    %c0_0 = arith.constant 0 : index
    %0 = vector.load %arg0[%c0, %c0_0] : memref<8x16xf32, #tpu.memory_space<vmem>>, vector<8x16xf32>
    %c0_1 = arith.constant 0 : index
    %c0_2 = arith.constant 0 : index
    %1 = vector.load %arg4[%c0_1, %c0_2] : memref<3x64xf32, #tpu.memory_space<vmem>>, vector<1x64xf32>
    %c1 = arith.constant 1 : index
    %c0_3 = arith.constant 0 : index
    %2 = vector.load %arg4[%c1, %c0_3] : memref<3x64xf32, #tpu.memory_space<vmem>>, vector<1x64xf32>
    %c2 = arith.constant 2 : index
    %c0_4 = arith.constant 0 : index
    %3 = vector.load %arg4[%c2, %c0_4] : memref<3x64xf32, #tpu.memory_space<vmem>>, vector<1x1xf32>
    %c0_5 = arith.constant 0 : index
    %c0_6 = arith.constant 0 : index
    %4 = vector.load %arg1[%c0_5, %c0_6] : memref<16x64xf32, #tpu.memory_space<vmem>>, vector<16x64xf32>
    %cst = arith.constant dense<0.000000e+00> : vector<8x64xf32>
    %5 = tpu.matmul %0, %4, %cst {dimension_numbers = #tpu.dot_dimension_numbers<[1], [0], [0], [1], [0, 0, 1, 1], [], []>} : vector<8x16xf32>, vector<16x64xf32>, vector<8x64xf32> -> vector<8x64xf32>
    %6 = vector.broadcast %1 : vector<1x64xf32> to vector<8x64xf32>
    %7 = arith.addf %5, %6 : vector<8x64xf32>
    %cst_7 = arith.constant 0.000000e+00 : f32
    %8 = vector.broadcast %cst_7 : f32 to vector<8x64xf32>
    %9 = arith.maximumf %7, %8 : vector<8x64xf32>
    %c0_8 = arith.constant 0 : index
    %c0_9 = arith.constant 0 : index
    %10 = vector.load %arg2[%c0_8, %c0_9] : memref<64x64xf32, #tpu.memory_space<vmem>>, vector<64x64xf32>
    %cst_10 = arith.constant dense<0.000000e+00> : vector<8x64xf32>
    %11 = tpu.matmul %9, %10, %cst_10 {dimension_numbers = #tpu.dot_dimension_numbers<[1], [0], [0], [1], [0, 0, 1, 1], [], []>} : vector<8x64xf32>, vector<64x64xf32>, vector<8x64xf32> -> vector<8x64xf32>
    %12 = vector.broadcast %2 : vector<1x64xf32> to vector<8x64xf32>
    %13 = arith.addf %11, %12 : vector<8x64xf32>
    %cst_11 = arith.constant 0.000000e+00 : f32
    %14 = vector.broadcast %cst_11 : f32 to vector<8x64xf32>
    %15 = arith.maximumf %13, %14 : vector<8x64xf32>
    %c0_12 = arith.constant 0 : index
    %c0_13 = arith.constant 0 : index
    %16 = vector.load %arg3[%c0_12, %c0_13] : memref<64x1xf32, #tpu.memory_space<vmem>>, vector<64x1xf32>
    %cst_14 = arith.constant dense<0.000000e+00> : vector<8x1xf32>
    %17 = tpu.matmul %15, %16, %cst_14 {dimension_numbers = #tpu.dot_dimension_numbers<[1], [0], [0], [1], [0, 0, 1, 1], [], []>} : vector<8x64xf32>, vector<64x1xf32>, vector<8x1xf32> -> vector<8x1xf32>
    %18 = vector.broadcast %3 : vector<1x1xf32> to vector<8x1xf32>
    %19 = arith.addf %17, %18 : vector<8x1xf32>
    %c0_15 = arith.constant 0 : index
    %c0_16 = arith.constant 0 : index
    %20 = vector.load %arg5[%c0_15, %c0_16] : memref<8x1xf32, #tpu.memory_space<vmem>>, vector<8x1xf32>
    tpu.vector_store %arg5[%c0_15, %c0_16], %19 {strides = array<i32>} : memref<8x1xf32, #tpu.memory_space<vmem>>, vector<8x1xf32>,
    return
  }
}

</mosaic_0001>

<llo_original>
// kernel: tpu_custom_call.1
$region0: #{tpu_custom_call.1}
  #allocation0 [shape = 'u32[]', space=smem, size = 0x4, offset = 0x4, fixed_abs, tag = 'smem constant byte address 0x4 - core index']
  #allocation1 [shape = 'u32[144,128]{1,0:T(1,128)}', space=vmem, size = 0x12000, scoped, tag = 'internal scratch']
  %s0 = inlined_call_operand.vmem [shape: f32[8,16], index: 0, kind: input, shape index: {}]
  %s1 = inlined_call_operand.hbm [shape: f32[16,64], index: 1, kind: input, shape index: {}]
  %s2 = inlined_call_operand.vmem [shape: f32[64,64], index: 2, kind: input, shape index: {}]
  %s3 = inlined_call_operand.vmem [shape: f32[64,1], index: 3, kind: input, shape index: {}]
  %s4 = inlined_call_operand.vmem [shape: f32[3,64], index: 4, kind: input, shape index: {}]
  %s5 = inlined_call_operand.vmem [shape: f32[8,1], index: 5, kind: output, shape index: {}]
  %s6 = sld [smem:[#allocation0]]
  $region34: #{tpu_custom_call.1} parent=0
    _
  %s8 = ssub.s32 1, %s6
  %s9 = scalar_select 0, %s8, %s6
  $region1: #{tpu_custom_call.1} parent=0
    #allocation2 [shape = 'u8[8192]{0}', space=vmem, size = 0x2000, scoped, tag = 'input window, operand 1, single buffered']
    #allocation3 [shape = 's32[1]{0}', space=sflag, size = 0x4, scoped, tag = 'scoped memory for tpu_custom_call.1']
    %10 = vsyncpa [#allocation3], 0
    // Predicated region
    $region2: #{tpu_custom_call.1} parent=1 // pred_check
      _
    $region3: #{tpu_custom_call.1} parent=1 // pred_check_branch
      %12 = sbr.rel (0) target = $region5
    $region4: #{tpu_custom_call.1} parent=1 // pred_region
      _
    $region5: #{tpu_custom_call.1} parent=1 // pred_fallthru
      _
    // Predicated region
    $region6: #{tpu_custom_call.1} parent=1 // pred_check
      _
    $region7: #{tpu_custom_call.1} parent=1 // pred_check_branch
      %14 = sbr.rel (0) target = $region9
    $region8: #{tpu_custom_call.1} parent=1 // pred_region
      %s16 = ssub.s32 256, 256
      %17 = vsyncadd [#allocation3], %s16
      %s18 = sshll.u32 [#allocation2], 4
      %s19 = int_to_ptr.vmem [resolvable:$true] %s18
      %24 = dma.hbm_to_vmem [thread:$0]  %s1, 256, %s19, [#allocation3], 128, 128, 8
    $region9: #{tpu_custom_call.1} parent=1 // pred_fallthru
      _
    // Predicated region
    $region10: #{tpu_custom_call.1} parent=1 // pred_check
      _
    $region11: #{tpu_custom_call.1} parent=1 // pred_check_branch
      %26 = sbr.rel (0) target = $region13
    $region12: #{tpu_custom_call.1} parent=1 // pred_region
      _
    $region13: #{tpu_custom_call.1} parent=1 // pred_fallthru
      _
    // Predicated region
    $region14: #{tpu_custom_call.1} parent=1 // pred_check
      _
    $region15: #{tpu_custom_call.1} parent=1 // pred_check_branch
      %28 = sbr.rel (0) target = $region17
    $region16: #{tpu_custom_call.1} parent=1 // pred_region
      _
    $region17: #{tpu_custom_call.1} parent=1 // pred_fallthru
      _
    // Predicated region
    $region18: #{tpu_custom_call.1} parent=1 // pred_check
      _
    $region19: #{tpu_custom_call.1} parent=1 // pred_check_branch
      %30 = sbr.rel (0) target = $region21
    $region20: #{tpu_custom_call.1} parent=1 // pred_region
      _
    $region21: #{tpu_custom_call.1} parent=1 // pred_fallthru
      _
    // Predicated region
    $region22: #{tpu_custom_call.1} parent=1 // pred_check
      _
    $region23: #{tpu_custom_call.1} parent=1 // pred_check_branch
      %32 = sbr.rel (0) target = $region25
    $region24: #{tpu_custom_call.1} parent=1 // pred_region
      %33 = dma.done [#allocation3], 256
    $region25: #{tpu_custom_call.1} parent=1 // pred_fallthru
      _
    %v34 = vld [vmem:[%s0] sm:$0xff]
    %v35 = vld [vmem:[%s4] sm:$0x1]
    %v36 = vld [vmem:[%s4 + $0x1] sm:$0x1]
    %v37 = vld [vmem:[%s4 + $0x2] sm:$0x1]
    %v38 = vld [vmem:[#allocation2] sm:$0xff]
    %v39 = vld [vmem:[#allocation2 + $0x8] sm:$0xff]
    %v40 = vlaneseq
    %v41 = vshrl.u32 %v40, 7
    %v42 = vsub.s32 0, %v41
    %v43 = vrot.slane %v35, %v42
    %vm44 = vcmask 130048
    %v46 = vsel %vm44, %v34, 0
    %48 = vmatprep.subr.mxu0 0.0
    %49 = vmatpush1.msra.mxu0 %v38
    %50 = vmatprep.subr.mxu0 0.0
    %51 = vmatpush1.msra.mxu0 %v39
    %52 = vmatprep.subr.mxu0 0.0
    %53 = vmatpush1.msra.mxu0 0.0
    %54 = vmatprep.subr.mxu0 0.0
    %55 = vmatpush1.msra.mxu0 0.0
    %56 = vmatprep.subr.mxu0 0.0
    %57 = vmatpush1.msra.mxu0 0.0
    %58 = vmatprep.subr.mxu0 0.0
    %59 = vmatpush1.msra.mxu0 0.0
    %60 = vmatprep.subr.mxu0 0.0
    %61 = vmatpush1.msra.mxu0 0.0
    %62 = vmatprep.subr.mxu0 0.0
    %63 = vmatpush1.msra.mxu0 0.0
    %64 = vmatprep.subr.mxu0 0.0
    %65 = vmatpush1.msra.mxu0 0.0
    %66 = vmatprep.subr.mxu0 0.0
    %67 = vmatpush1.msra.mxu0 0.0
    %68 = vmatprep.subr.mxu0 0.0
    %69 = vmatpush1.msra.mxu0 0.0
    %70 = vmatprep.subr.mxu0 0.0
    %71 = vmatpush1.msra.mxu0 0.0
    %72 = vmatprep.subr.mxu0 0.0
    %73 = vmatpush1.msra.mxu0 0.0
    %74 = vmatprep.subr.mxu0 0.0
    %75 = vmatpush1.msra.mxu0 0.0
    %76 = vmatprep.subr.mxu0 0.0
    %77 = vmatpush1.msra.mxu0 0.0
    %78 = vmatprep.subr.mxu0 0.0
    %79 = vmatpush1.msra.mxu0 0.0
    %80 = vmatprep.subr.mxu0 0.0
    %81 = vmatpush1.msra.mxu0 0.0
    %82 = vmatprep.subr.mxu0 0.0
    %83 = vmatpush1.msra.mxu0 0.0
    %84 = vmatprep.subr.mxu0 0.0
    %85 = vmatpush1.msra.mxu0 0.0
    %86 = vmatprep.subr.mxu0 0.0
    %87 = vmatpush1.msra.mxu0 0.0
    %88 = vmatprep.subr.mxu0 0.0
    %89 = vmatpush1.msra.mxu0 0.0
    %90 = vmatprep.subr.mxu0 0.0
    %91 = vmatpush1.msra.mxu0 0.0
    %92 = vmatprep.subr.mxu0 0.0
    %93 = vmatpush1.msra.mxu0 0.0
    %94 = vmatprep.subr.mxu0 0.0
    %95 = vmatpush1.msra.mxu0 0.0
    %96 = vmatprep.subr.mxu0 0.0
    %97 = vmatpush1.msra.mxu0 0.0
    %98 = vmatprep.subr.mxu0 0.0
    %99 = vmatpush1.msra.mxu0 0.0
    %100 = vmatprep.subr.mxu0 0.0
    %101 = vmatpush1.msra.mxu0 0.0
    %102 = vmatprep.subr.mxu0 0.0
    %103 = vmatpush1.msra.mxu0 0.0
    %104 = vmatprep.subr.mxu0 0.0
    %105 = vmatpush1.msra.mxu0 0.0
    %106 = vmatprep.subr.mxu0 0.0
    %107 = vmatpush1.msra.mxu0 0.0
    %108 = vmatprep.subr.mxu0 0.0
    %109 = vmatpush1.msra.mxu0 0.0
    %110 = vmatprep.subr.mxu0 0.0
    %111 = vmatpush1.msra.mxu0 0.0
    %112 = vmatprep.mubr.f32.mxu0 0.0
    %113 = vmatmul.mubr.f32.gmra.mrb[0].mxu0 %v46
    %v114 = vpop.f32.mrb[0].mxu0
    %v115 = vadd.f32 %v43, %v114
    %v116 = vpop.f32.mrb[0].mxu0
    %117 = vdwg.mxu0
    %v118 = vmax.f32 %v115, 0.0
    %v119 = vld [vmem:[%s2] sm:$0xff]
    %v120 = vld [vmem:[%s2 + $0x8] sm:$0xff]
    %v121 = vld [vmem:[%s2 + $0x10] sm:$0xff]
    %v122 = vld [vmem:[%s2 + $0x18] sm:$0xff]
    %v123 = vld [vmem:[%s2 + $0x20] sm:$0xff]
    %v124 = vld [vmem:[%s2 + $0x28] sm:$0xff]
    %v125 = vld [vmem:[%s2 + $0x30] sm:$0xff]
    %v126 = vld [vmem:[%s2 + $0x38] sm:$0xff]
    %v127 = vlaneseq
    %v128 = vshrl.u32 %v127, 7
    %v129 = vsub.s32 0, %v128
    %v130 = vrot.slane %v36, %v129
    %vm131 = vcmask 523264
    %v133 = vsel %vm131, %v118, 0
    %135 = vmatprep.subr.mxu0 0.0
    %136 = vmatpush1.msra.mxu0 %v119
    %137 = vmatprep.subr.mxu0 0.0
    %138 = vmatpush1.msra.mxu0 %v120
    %139 = vmatprep.subr.mxu0 0.0
    %140 = vmatpush1.msra.mxu0 %v121
    %141 = vmatprep.subr.mxu0 0.0
    %142 = vmatpush1.msra.mxu0 %v122
    %143 = vmatprep.subr.mxu0 0.0
    %144 = vmatpush1.msra.mxu0 %v123
    %145 = vmatprep.subr.mxu0 0.0
    %146 = vmatpush1.msra.mxu0 %v124
    %147 = vmatprep.subr.mxu0 0.0
    %148 = vmatpush1.msra.mxu0 %v125
    %149 = vmatprep.subr.mxu0 0.0
    %150 = vmatpush1.msra.mxu0 %v126
    %151 = vmatprep.subr.mxu0 0.0
    %152 = vmatpush1.msra.mxu0 0.0
    %153 = vmatprep.subr.mxu0 0.0
    %154 = vmatpush1.msra.mxu0 0.0
    %155 = vmatprep.subr.mxu0 0.0
    %156 = vmatpush1.msra.mxu0 0.0
    %157 = vmatprep.subr.mxu0 0.0
    %158 = vmatpush1.msra.mxu0 0.0
    %159 = vmatprep.subr.mxu0 0.0
    %160 = vmatpush1.msra.mxu0 0.0
    %161 = vmatprep.subr.mxu0 0.0
    %162 = vmatpush1.msra.mxu0 0.0
    %163 = vmatprep.subr.mxu0 0.0
    %164 = vmatpush1.msra.mxu0 0.0
    %165 = vmatprep.subr.mxu0 0.0
    %166 = vmatpush1.msra.mxu0 0.0
    %167 = vmatprep.subr.mxu0 0.0
    %168 = vmatpush1.msra.mxu0 0.0
    %169 = vmatprep.subr.mxu0 0.0
    %170 = vmatpush1.msra.mxu0 0.0
    %171 = vmatprep.subr.mxu0 0.0
    %172 = vmatpush1.msra.mxu0 0.0
    %173 = vmatprep.subr.mxu0 0.0
    %174 = vmatpush1.msra.mxu0 0.0
    %175 = vmatprep.subr.mxu0 0.0
    %176 = vmatpush1.msra.mxu0 0.0
    %177 = vmatprep.subr.mxu0 0.0
    %178 = vmatpush1.msra.mxu0 0.0
    %179 = vmatprep.subr.mxu0 0.0
    %180 = vmatpush1.msra.mxu0 0.0
    %181 = vmatprep.subr.mxu0 0.0
    %182 = vmatpush1.msra.mxu0 0.0
    %183 = vmatprep.subr.mxu0 0.0
    %184 = vmatpush1.msra.mxu0 0.0
    %185 = vmatprep.subr.mxu0 0.0
    %186 = vmatpush1.msra.mxu0 0.0
    %187 = vmatprep.subr.mxu0 0.0
    %188 = vmatpush1.msra.mxu0 0.0
    %189 = vmatprep.subr.mxu0 0.0
    %190 = vmatpush1.msra.mxu0 0.0
    %191 = vmatprep.subr.mxu0 0.0
    %192 = vmatpush1.msra.mxu0 0.0
    %193 = vmatprep.subr.mxu0 0.0
    %194 = vmatpush1.msra.mxu0 0.0
    %195 = vmatprep.subr.mxu0 0.0
    %196 = vmatpush1.msra.mxu0 0.0
    %197 = vmatprep.subr.mxu0 0.0
    %198 = vmatpush1.msra.mxu0 0.0
    %199 = vmatprep.mubr.f32.mxu0 0.0
    %200 = vmatmul.mubr.f32.gmra.mrb[0].mxu0 %v133
    %v201 = vpop.f32.mrb[0].mxu0
    %v202 = vadd.f32 %v130, %v201
    %v203 = vpop.f32.mrb[0].mxu0
    %204 = vdwg.mxu0
    %v205 = vmax.f32 %v202, 0.0
    %v206 = vld [vmem:[%s3] sm:$0xff]
    %v207 = vld [vmem:[%s3 + $0x8] sm:$0xff]
    %v208 = vld [vmem:[%s3 + $0x10] sm:$0xff]
    %v209 = vld [vmem:[%s3 + $0x18] sm:$0xff]
    %v210 = vld [vmem:[%s3 + $0x20] sm:$0xff]
    %v211 = vld [vmem:[%s3 + $0x28] sm:$0xff]
    %v212 = vld [vmem:[%s3 + $0x30] sm:$0xff]
    %v213 = vld [vmem:[%s3 + $0x38] sm:$0xff]
    %v214 = vlaneseq
    %v215 = vshrl.u32 %v214, 7
    %v216 = vsub.s32 0, %v215
    %v217 = vrot.slane %v37, %v216
    %v219 = vsel %vm131, %v205, 0
    %221 = vmatprep.subr.mxu0 0.0
    %222 = vmatpush1.msra.mxu0 %v206
    %223 = vmatprep.subr.mxu0 0.0
    %224 = vmatpush1.msra.mxu0 %v207
    %225 = vmatprep.subr.mxu0 0.0
    %226 = vmatpush1.msra.mxu0 %v208
    %227 = vmatprep.subr.mxu0 0.0
    %228 = vmatpush1.msra.mxu0 %v209
    %229 = vmatprep.subr.mxu0 0.0
    %230 = vmatpush1.msra.mxu0 %v210
    %231 = vmatprep.subr.mxu0 0.0
    %232 = vmatpush1.msra.mxu0 %v211
    %233 = vmatprep.subr.mxu0 0.0
    %234 = vmatpush1.msra.mxu0 %v212
    %235 = vmatprep.subr.mxu0 0.0
    %236 = vmatpush1.msra.mxu0 %v213
    %237 = vmatprep.subr.mxu0 0.0
    %238 = vmatpush1.msra.mxu0 0.0
    %239 = vmatprep.subr.mxu0 0.0
    %240 = vmatpush1.msra.mxu0 0.0
    %241 = vmatprep.subr.mxu0 0.0
    %242 = vmatpush1.msra.mxu0 0.0
    %243 = vmatprep.subr.mxu0 0.0
    %244 = vmatpush1.msra.mxu0 0.0
    %245 = vmatprep.subr.mxu0 0.0
    %246 = vmatpush1.msra.mxu0 0.0
    %247 = vmatprep.subr.mxu0 0.0
    %248 = vmatpush1.msra.mxu0 0.0
    %249 = vmatprep.subr.mxu0 0.0
    %250 = vmatpush1.msra.mxu0 0.0
    %251 = vmatprep.subr.mxu0 0.0
    %252 = vmatpush1.msra.mxu0 0.0
    %253 = vmatprep.subr.mxu0 0.0
    %254 = vmatpush1.msra.mxu0 0.0
    %255 = vmatprep.subr.mxu0 0.0
    %256 = vmatpush1.msra.mxu0 0.0
    %257 = vmatprep.subr.mxu0 0.0
    %258 = vmatpush1.msra.mxu0 0.0
    %259 = vmatprep.subr.mxu0 0.0
    %260 = vmatpush1.msra.mxu0 0.0
    %261 = vmatprep.subr.mxu0 0.0
    %262 = vmatpush1.msra.mxu0 0.0
    %263 = vmatprep.subr.mxu0 0.0
    %264 = vmatpush1.msra.mxu0 0.0
    %265 = vmatprep.subr.mxu0 0.0
    %266 = vmatpush1.msra.mxu0 0.0
    %267 = vmatprep.subr.mxu0 0.0
    %268 = vmatpush1.msra.mxu0 0.0
    %269 = vmatprep.subr.mxu0 0.0
    %270 = vmatpush1.msra.mxu0 0.0
    %271 = vmatprep.subr.mxu0 0.0
    %272 = vmatpush1.msra.mxu0 0.0
    %273 = vmatprep.subr.mxu0 0.0
    %274 = vmatpush1.msra.mxu0 0.0
    %275 = vmatprep.subr.mxu0 0.0
    %276 = vmatpush1.msra.mxu0 0.0
    %277 = vmatprep.subr.mxu0 0.0
    %278 = vmatpush1.msra.mxu0 0.0
    %279 = vmatprep.subr.mxu0 0.0
    %280 = vmatpush1.msra.mxu0 0.0
    %281 = vmatprep.subr.mxu0 0.0
    %282 = vmatpush1.msra.mxu0 0.0
    %283 = vmatprep.subr.mxu0 0.0
    %284 = vmatpush1.msra.mxu0 0.0
    %285 = vmatprep.mubr.f32.mxu0 0.0
    %286 = vmatmul.mubr.f32.gmra.mrb[0].mxu0 %v219
    %v287 = vpop.f32.mrb[0].mxu0
    %v288 = vadd.f32 %v217, %v287
    %v289 = vpop.f32.mrb[0].mxu0
    %290 = vdwg.mxu0
    %vm291 = vcmask 7168
    %292 = vst.msk [vmem:[%s5] sm:$0xff] %vm291, %v288
    // Predicated region
    $region26: #{tpu_custom_call.1} parent=1 // pred_check
      _
    $region27: #{tpu_custom_call.1} parent=1 // pred_check_branch
      %294 = sbr.rel (0) target = $region29
    $region28: #{tpu_custom_call.1} parent=1 // pred_region
      _
    $region29: #{tpu_custom_call.1} parent=1 // pred_fallthru
      _
    // Predicated region
    $region30: #{tpu_custom_call.1} parent=1 // pred_check
      _
    $region31: #{tpu_custom_call.1} parent=1 // pred_check_branch
      %296 = sbr.rel (0) target = $region33
    $region32: #{tpu_custom_call.1} parent=1 // pred_region
      _
    $region33: #{tpu_custom_call.1} parent=1 // pred_fallthru
      _
    %297 = vsyncpa [#allocation3], 1

</llo_original>
